<compile_context>
chip_gen: v7x
topology: tpu7x:2x2x1
jax: 0.10.0
libtpu: 0.0.40
codegen_flags: <defaults>
</compile_context>

<pallas_src>
import jax
import jax.numpy as jnp
from jax.experimental import pallas as pl
from jax.experimental.pallas import tpu as pltpu

L1 = 4     # input features
L2 = 150   # hidden units
L3 = 2     # actions


def _policy_net_kernel(x_ref, w1t_ref, b1_ref, w2_ref, b2_ref, o_ref):
    x = x_ref[...]                                   # [B, 4]
    n_in = x_ref.shape[1]

    # fc1 on the VPU: unrolled broadcast multiply-adds (K=4 is MXU-wasteful).
    #   h[b, j] = sum_k x[b, k] * w1t[k, j] + b1[j]
    h = b1_ref[...] + x[:, 0:1] * w1t_ref[0:1, :]    # [B, 150]
    for k in range(1, n_in):                         # static unroll, 3 FMAs
        h = h + x[:, k:k + 1] * w1t_ref[k:k + 1, :]

    # leaky_relu_ (PyTorch default negative_slope = 0.01)
    h = jnp.where(h > 0, h, 0.01 * h)                # [B, 150]

    # fc2 as two VPU multiplies + cross-lane (XLU) reductions; w2 is kept in
    # its natural [2, 150] layout (no padded MXU matmul, no 77 KB weight DMA).
    w2 = w2_ref[...]                                 # [2, 150]
    z0 = jnp.sum(h * w2[0:1, :], axis=-1, keepdims=True)   # [B, 1]
    z1 = jnp.sum(h * w2[1:2, :], axis=-1, keepdims=True)   # [B, 1]
    z = jnp.concatenate([z0, z1], axis=-1) + b2_ref[...]   # [B, 2]

    # softmax over dim=0 (batch axis), numerically stable, per column.
    # Exact divide (not approx reciprocal) so columns sum to 1 to f32 eps.
    z = z - jnp.max(z, axis=0, keepdims=True)
    e = jnp.exp(z)
    o_ref[...] = (e / jnp.sum(e, axis=0, keepdims=True)).astype(o_ref.dtype)


def prepare_params(w1, b1, w2, b2):
    """One-time weight prep (do this OUTSIDE the rollout loop).

    w1: [150, 4], b1: [150], w2: [2, 150], b2: [2]
    Returns (w1t [4,150], b1 [1,150], w2 [2,150], b2 [1,2]) as f32.
    """
    w1t = jnp.asarray(w1, jnp.float32).T                      # [4, 150]
    b1r = jnp.asarray(b1, jnp.float32).reshape(1, -1)         # [1, 150]
    w2r = jnp.asarray(w2, jnp.float32)                        # [2, 150]
    b2r = jnp.asarray(b2, jnp.float32).reshape(1, -1)         # [1, 2]
    return w1t, b1r, w2r, b2r


def cartpole_policy_forward(x, params):
    """x: [B, 4] f32 batch of states; params: output of prepare_params().

    Returns softmax(fc2(leaky_relu(fc1(x))), dim=0)  -> [B, 2] probabilities.
    """
    w1t, b1r, w2r, b2r = params
    x = jnp.asarray(x, jnp.float32)
    B = x.shape[0]
    n_actions = w2r.shape[0]
    hidden = w1t.shape[1]

    # FLOPs: fc1 (2*B*4*150) + leaky (2*B*150) + fc2 (2*B*150*2) + softmax.
    flops = 2 * B * (w1t.shape[0] * hidden) + 2 * B * hidden \
        + 2 * B * hidden * n_actions + 6 * B * n_actions
    bytes_accessed = 4 * (x.size + w1t.size + b1r.size + w2r.size + b2r.size
                          + B * n_actions)

    # Live set ~ x + params + h + a few [B, n_actions] temporaries; set an
    # explicit VMEM limit with 4x headroom so the budget is visible and safe
    # on v7x (64 MiB physical) as well as v5e/v6e (128 MiB).
    live_bytes = 4 * (x.size + w1t.size + b1r.size + w2r.size + b2r.size
                      + B * (2 * hidden + 4 * n_actions))
    vmem_limit = int(min(64 * 1024 * 1024, max(1 << 20, 4 * live_bytes)))

    vmem = pl.BlockSpec(memory_space=pltpu.MemorySpace.VMEM)
    return pl.pallas_call(
        _policy_net_kernel,
        out_shape=jax.ShapeDtypeStruct((B, n_actions), jnp.float32),
        in_specs=[vmem, vmem, vmem, vmem, vmem],
        out_specs=vmem,
        compiler_params=pltpu.CompilerParams(vmem_limit_bytes=vmem_limit),
        cost_estimate=pl.CostEstimate(
            flops=flops,
            transcendentals=B * n_actions,
            bytes_accessed=bytes_accessed),
    )(x, w1t, b1r, w2r, b2r)


def _reference_forward(x, w1, b1, w2, b2):
    h = x @ w1.T + b1
    h = jnp.where(h > 0, h, 0.01 * h)
    z = h @ w2.T + b2
    return jax.nn.softmax(z, axis=0)


if __name__ == "__main__":
    key = jax.random.PRNGKey(0)
    k_x, k_x2, k_w1, k_b1, k_w2, k_b2 = jax.random.split(key, 6)

    # Deterministic PyTorch-style uniform(-1/sqrt(fan_in), 1/sqrt(fan_in)) init.
    bound1 = 1.0 / jnp.sqrt(jnp.float32(L1))
    bound2 = 1.0 / jnp.sqrt(jnp.float32(L2))
    w1 = jax.random.uniform(k_w1, (L2, L1), jnp.float32, -bound1, bound1)
    b1 = jax.random.uniform(k_b1, (L2,),   jnp.float32, -bound1, bound1)
    w2 = jax.random.uniform(k_w2, (L3, L2), jnp.float32, -bound2, bound2)
    b2 = jax.random.uniform(k_b2, (L3,),   jnp.float32, -bound2, bound2)

    params = prepare_params(w1, b1, w2, b2)      # one-time, outside the loop

    # Batched rollout case (feedback: amortize launch overhead, B multiple of 8).
    B = 128
    x = jax.random.normal(k_x, (B, L1), jnp.float32)
    out = jax.block_until_ready(cartpole_policy_forward(x, params))
    ref = _reference_forward(x, w1, b1, w2, b2)
    assert out.shape == (B, L3), out.shape
    assert jnp.allclose(out, ref, atol=1e-5, rtol=1e-5)
    assert jnp.allclose(jnp.sum(out, axis=0), jnp.ones((L3,)), atol=1e-5)

    # Small / ragged batch also works (grid-less, whole batch resident).
    B2 = 5
    x2 = jax.random.normal(k_x2, (B2, L1), jnp.float32)
    out2 = jax.block_until_ready(cartpole_policy_forward(x2, params))
    ref2 = _reference_forward(x2, w1, b1, w2, b2)
    assert out2.shape == (B2, L3), out2.shape
    assert jnp.allclose(out2, ref2, atol=1e-5, rtol=1e-5)
    assert jnp.allclose(jnp.sum(out2, axis=0), jnp.ones((L3,)), atol=1e-5)

    print("KERNEL_OK")
</pallas_src>

<mosaic_0001>
module attributes {stable_mosaic.version = 11 : i64} {
  func.func @_policy_net_kernel(%arg0: memref<128x4xf32, #tpu.memory_space<vmem>>, %arg1: memref<4x150xf32, #tpu.memory_space<vmem>>, %arg2: memref<1x150xf32, #tpu.memory_space<vmem>>, %arg3: memref<2x150xf32, #tpu.memory_space<vmem>>, %arg4: memref<1x2xf32, #tpu.memory_space<vmem>>, %arg5: memref<128x2xf32, #tpu.memory_space<vmem>>) attributes {dimension_semantics = [], scalar_prefetch = 0 : i64, scratch_operands = 0 : i64, tpu.core_type = #tpu.core_type<tc>} {
    %c0 = arith.constant 0 : index
    %c0_0 = arith.constant 0 : index
    %0 = vector.load %arg0[%c0, %c0_0] : memref<128x4xf32, #tpu.memory_space<vmem>>, vector<128x4xf32>
    %c0_1 = arith.constant 0 : index
    %c0_2 = arith.constant 0 : index
    %1 = vector.load %arg2[%c0_1, %c0_2] : memref<1x150xf32, #tpu.memory_space<vmem>>, vector<1x150xf32>
    %2 = vector.extract_strided_slice %0 {offsets = [0, 0], sizes = [128, 1], strides = [1, 1]} : vector<128x4xf32> to vector<128x1xf32>
    %c0_3 = arith.constant 0 : index
    %c0_4 = arith.constant 0 : index
    %3 = vector.load %arg1[%c0_3, %c0_4] : memref<4x150xf32, #tpu.memory_space<vmem>>, vector<1x150xf32>
    %4 = vector.broadcast %2 : vector<128x1xf32> to vector<128x150xf32>
    %5 = vector.broadcast %3 : vector<1x150xf32> to vector<128x150xf32>
    %6 = arith.mulf %4, %5 : vector<128x150xf32>
    %7 = vector.broadcast %1 : vector<1x150xf32> to vector<128x150xf32>
    %8 = arith.addf %7, %6 : vector<128x150xf32>
    %9 = vector.extract_strided_slice %0 {offsets = [0, 1], sizes = [128, 1], strides = [1, 1]} : vector<128x4xf32> to vector<128x1xf32>
    %c1 = arith.constant 1 : index
    %c0_5 = arith.constant 0 : index
    %10 = vector.load %arg1[%c1, %c0_5] : memref<4x150xf32, #tpu.memory_space<vmem>>, vector<1x150xf32>
    %11 = vector.broadcast %9 : vector<128x1xf32> to vector<128x150xf32>
    %12 = vector.broadcast %10 : vector<1x150xf32> to vector<128x150xf32>
    %13 = arith.mulf %11, %12 : vector<128x150xf32>
    %14 = arith.addf %8, %13 : vector<128x150xf32>
    %15 = vector.extract_strided_slice %0 {offsets = [0, 2], sizes = [128, 1], strides = [1, 1]} : vector<128x4xf32> to vector<128x1xf32>
    %c2 = arith.constant 2 : index
    %c0_6 = arith.constant 0 : index
    %16 = vector.load %arg1[%c2, %c0_6] : memref<4x150xf32, #tpu.memory_space<vmem>>, vector<1x150xf32>
    %17 = vector.broadcast %15 : vector<128x1xf32> to vector<128x150xf32>
    %18 = vector.broadcast %16 : vector<1x150xf32> to vector<128x150xf32>
    %19 = arith.mulf %17, %18 : vector<128x150xf32>
    %20 = arith.addf %14, %19 : vector<128x150xf32>
    %21 = vector.extract_strided_slice %0 {offsets = [0, 3], sizes = [128, 1], strides = [1, 1]} : vector<128x4xf32> to vector<128x1xf32>
    %c3 = arith.constant 3 : index
    %c0_7 = arith.constant 0 : index
    %22 = vector.load %arg1[%c3, %c0_7] : memref<4x150xf32, #tpu.memory_space<vmem>>, vector<1x150xf32>
    %23 = vector.broadcast %21 : vector<128x1xf32> to vector<128x150xf32>
    %24 = vector.broadcast %22 : vector<1x150xf32> to vector<128x150xf32>
    %25 = arith.mulf %23, %24 : vector<128x150xf32>
    %26 = arith.addf %20, %25 : vector<128x150xf32>
    %cst = arith.constant 0.000000e+00 : f32
    %27 = vector.broadcast %cst : f32 to vector<128x150xf32>
    %28 = arith.cmpf ogt, %26, %27 : vector<128x150xf32>
    %cst_8 = arith.constant 0.00999999977 : f32
    %29 = vector.broadcast %cst_8 : f32 to vector<128x150xf32>
    %30 = arith.mulf %29, %26 : vector<128x150xf32>
    %31 = arith.select %28, %26, %30 : vector<128x150xi1>, vector<128x150xf32>
    %c0_9 = arith.constant 0 : index
    %c0_10 = arith.constant 0 : index
    %32 = vector.load %arg3[%c0_9, %c0_10] : memref<2x150xf32, #tpu.memory_space<vmem>>, vector<2x150xf32>
    %33 = vector.extract_strided_slice %32 {offsets = [0, 0], sizes = [1, 150], strides = [1, 1]} : vector<2x150xf32> to vector<1x150xf32>
    %34 = vector.broadcast %33 : vector<1x150xf32> to vector<128x150xf32>
    %35 = arith.mulf %31, %34 : vector<128x150xf32>
    %cst_11 = arith.constant dense<0.000000e+00> : vector<128xf32>
    %36 = vector.multi_reduction <add>, %35, %cst_11 [1] : vector<128x150xf32> to vector<128xf32>
    %37 = vector.shape_cast %36 : vector<128xf32> to vector<128x1xf32>
    %38 = vector.extract_strided_slice %32 {offsets = [1, 0], sizes = [1, 150], strides = [1, 1]} : vector<2x150xf32> to vector<1x150xf32>
    %39 = vector.broadcast %38 : vector<1x150xf32> to vector<128x150xf32>
    %40 = arith.mulf %31, %39 : vector<128x150xf32>
    %cst_12 = arith.constant dense<0.000000e+00> : vector<128xf32>
    %41 = vector.multi_reduction <add>, %40, %cst_12 [1] : vector<128x150xf32> to vector<128xf32>
    %42 = vector.shape_cast %41 : vector<128xf32> to vector<128x1xf32>
    %43 = tpu.concatenate %37, %42 in 1 : vector<128x1xf32>, vector<128x1xf32> -> vector<128x2xf32>
    %c0_13 = arith.constant 0 : index
    %c0_14 = arith.constant 0 : index
    %44 = vector.load %arg4[%c0_13, %c0_14] : memref<1x2xf32, #tpu.memory_space<vmem>>, vector<1x2xf32>
    %45 = vector.broadcast %44 : vector<1x2xf32> to vector<128x2xf32>
    %46 = arith.addf %43, %45 : vector<128x2xf32>
    %cst_15 = arith.constant dense<0xFF800000> : vector<2xf32>
    %47 = vector.multi_reduction <maximumf>, %46, %cst_15 [0] : vector<128x2xf32> to vector<2xf32>
    %48 = vector.shape_cast %47 : vector<2xf32> to vector<1x2xf32>
    %49 = vector.broadcast %48 : vector<1x2xf32> to vector<128x2xf32>
    %50 = arith.subf %46, %49 : vector<128x2xf32>
    %51 = math.exp %50 : vector<128x2xf32>
    %cst_16 = arith.constant dense<0.000000e+00> : vector<2xf32>
    %52 = vector.multi_reduction <add>, %51, %cst_16 [0] : vector<128x2xf32> to vector<2xf32>
    %53 = vector.shape_cast %52 : vector<2xf32> to vector<1x2xf32>
    %54 = vector.broadcast %53 : vector<1x2xf32> to vector<128x2xf32>
    %55 = arith.divf %51, %54 : vector<128x2xf32>
    %c0_17 = arith.constant 0 : index
    %c0_18 = arith.constant 0 : index
    %56 = vector.load %arg5[%c0_17, %c0_18] : memref<128x2xf32, #tpu.memory_space<vmem>>, vector<128x2xf32>
    tpu.vector_store %arg5[%c0_17, %c0_18], %55 {strides = array<i32>} : memref<128x2xf32, #tpu.memory_space<vmem>>, vector<128x2xf32>,
    return
  }
}

</mosaic_0001>

<llo_original>
// kernel: tpu_custom_call.1
$region0: #{tpu_custom_call.1}
  #allocation0 [shape = 'u32[]', space=smem, size = 0x4, offset = 0x4, fixed_abs, tag = 'smem constant byte address 0x4 - core index']
  #allocation1 [shape = 'u32[144,128]{1,0:T(1,128)}', space=vmem, size = 0x12000, scoped, tag = 'internal scratch']
  %s0 = inlined_call_operand.vmem [shape: f32[128,4], index: 0, kind: input, shape index: {}]
  %s1 = inlined_call_operand.vmem [shape: f32[4,150], index: 1, kind: input, shape index: {}]
  %s2 = inlined_call_operand.vmem [shape: f32[1,150], index: 2, kind: input, shape index: {}]
  %s3 = inlined_call_operand.vmem [shape: f32[2,150], index: 3, kind: input, shape index: {}]
  %s4 = inlined_call_operand.vmem [shape: f32[1,2], index: 4, kind: input, shape index: {}]
  %s5 = inlined_call_operand.vmem [shape: f32[128,2], index: 5, kind: output, shape index: {}]
  %s6 = sld [smem:[#allocation0]]
  $region30: #{tpu_custom_call.1} parent=0
    _
  %s8 = ssub.s32 1, %s6
  %s9 = scalar_select 0, %s8, %s6
  // Predicated region
  $region2: #{tpu_custom_call.1} parent=0 // pred_check
    _
  $region3: #{tpu_custom_call.1} parent=0 // pred_check_branch
    %11 = sbr.rel (0) target = $region5
  $region4: #{tpu_custom_call.1} parent=0 // pred_region
    _
  $region5: #{tpu_custom_call.1} parent=0 // pred_fallthru
    _
  // Predicated region
  $region6: #{tpu_custom_call.1} parent=0 // pred_check
    _
  $region7: #{tpu_custom_call.1} parent=0 // pred_check_branch
    %13 = sbr.rel (0) target = $region9
  $region8: #{tpu_custom_call.1} parent=0 // pred_region
    _
  $region9: #{tpu_custom_call.1} parent=0 // pred_fallthru
    _
  // Predicated region
  $region10: #{tpu_custom_call.1} parent=0 // pred_check
    _
  $region11: #{tpu_custom_call.1} parent=0 // pred_check_branch
    %15 = sbr.rel (0) target = $region13
  $region12: #{tpu_custom_call.1} parent=0 // pred_region
    _
  $region13: #{tpu_custom_call.1} parent=0 // pred_fallthru
    _
  // Predicated region
  $region14: #{tpu_custom_call.1} parent=0 // pred_check
    _
  $region15: #{tpu_custom_call.1} parent=0 // pred_check_branch
    %17 = sbr.rel (0) target = $region17
  $region16: #{tpu_custom_call.1} parent=0 // pred_region
    _
  $region17: #{tpu_custom_call.1} parent=0 // pred_fallthru
    _
  // Predicated region
  $region18: #{tpu_custom_call.1} parent=0 // pred_check
    _
  $region19: #{tpu_custom_call.1} parent=0 // pred_check_branch
    %19 = sbr.rel (0) target = $region21
  $region20: #{tpu_custom_call.1} parent=0 // pred_region
    _
  $region21: #{tpu_custom_call.1} parent=0 // pred_fallthru
    _
  %v20 = vld [vmem:[%s0] sm:$0xff]
  %v21 = vld [vmem:[%s0 + $0x8] sm:$0xff]
  %v22 = vld [vmem:[%s0 + $0x10] sm:$0xff]
  %v23 = vld [vmem:[%s0 + $0x18] sm:$0xff]
  %v24 = vld [vmem:[%s0 + $0x20] sm:$0xff]
  %v25 = vld [vmem:[%s0 + $0x28] sm:$0xff]
  %v26 = vld [vmem:[%s0 + $0x30] sm:$0xff]
  %v27 = vld [vmem:[%s0 + $0x38] sm:$0xff]
  %v28 = vld [vmem:[%s0 + $0x40] sm:$0xff]
  %v29 = vld [vmem:[%s0 + $0x48] sm:$0xff]
  %v30 = vld [vmem:[%s0 + $0x50] sm:$0xff]
  %v31 = vld [vmem:[%s0 + $0x58] sm:$0xff]
  %v32 = vld [vmem:[%s0 + $0x60] sm:$0xff]
  %v33 = vld [vmem:[%s0 + $0x68] sm:$0xff]
  %v34 = vld [vmem:[%s0 + $0x70] sm:$0xff]
  %v35 = vld [vmem:[%s0 + $0x78] sm:$0xff]
  %v36 = vld [vmem:[%s2] sm:$0x3]
  %v37 = vld [vmem:[%s1] ss:$4 sm:$0x3]
  %39 = vset.pattern.permute.xlu0 0
  %40 = vperm.xlu0 %39, %v20
  %v41 = vpop.permute.xlu0 %40
  %44 = vset.pattern.permute.xlu0 0
  %45 = vperm.xlu0 %44, %v21
  %v46 = vpop.permute.xlu0 %45
  %49 = vset.pattern.permute.xlu0 0
  %50 = vperm.xlu0 %49, %v22
  %v51 = vpop.permute.xlu0 %50
  %54 = vset.pattern.permute.xlu0 0
  %55 = vperm.xlu0 %54, %v23
  %v56 = vpop.permute.xlu0 %55
  %59 = vset.pattern.permute.xlu0 0
  %60 = vperm.xlu0 %59, %v24
  %v61 = vpop.permute.xlu0 %60
  %64 = vset.pattern.permute.xlu0 0
  %65 = vperm.xlu0 %64, %v25
  %v66 = vpop.permute.xlu0 %65
  %69 = vset.pattern.permute.xlu0 0
  %70 = vperm.xlu0 %69, %v26
  %v71 = vpop.permute.xlu0 %70
  %74 = vset.pattern.permute.xlu0 0
  %75 = vperm.xlu0 %74, %v27
  %v76 = vpop.permute.xlu0 %75
  %79 = vset.pattern.permute.xlu0 0
  %80 = vperm.xlu0 %79, %v28
  %v81 = vpop.permute.xlu0 %80
  %84 = vset.pattern.permute.xlu0 0
  %85 = vperm.xlu0 %84, %v29
  %v86 = vpop.permute.xlu0 %85
  %89 = vset.pattern.permute.xlu0 0
  %90 = vperm.xlu0 %89, %v30
  %v91 = vpop.permute.xlu0 %90
  %94 = vset.pattern.permute.xlu0 0
  %95 = vperm.xlu0 %94, %v31
  %v96 = vpop.permute.xlu0 %95
  %99 = vset.pattern.permute.xlu0 0
  %100 = vperm.xlu0 %99, %v32
  %v101 = vpop.permute.xlu0 %100
  %104 = vset.pattern.permute.xlu0 0
  %105 = vperm.xlu0 %104, %v33
  %v106 = vpop.permute.xlu0 %105
  %109 = vset.pattern.permute.xlu0 0
  %110 = vperm.xlu0 %109, %v34
  %v111 = vpop.permute.xlu0 %110
  %114 = vset.pattern.permute.xlu0 0
  %115 = vperm.xlu0 %114, %v35
  %v116 = vpop.permute.xlu0 %115
  %v119 = vlaneseq
  %v120 = vshrl.u32 %v119, 7
  %v121 = vsub.s32 0, %v120
  %v122 = vrot.slane %v37, %v121
  %v123 = vlaneseq
  %v124 = vshrl.u32 %v123, 7
  %v125 = vsub.s32 1, %v124
  %v126 = vrot.slane %v37, %v125
  %v129 = vmul.f32 %v41, %v122
  %v130 = vmul.f32 %v41, %v126
  %v131 = vmul.f32 %v46, %v122
  %v132 = vmul.f32 %v46, %v126
  %v133 = vmul.f32 %v51, %v122
  %v134 = vmul.f32 %v51, %v126
  %v135 = vmul.f32 %v56, %v122
  %v136 = vmul.f32 %v56, %v126
  %v137 = vmul.f32 %v61, %v122
  %v138 = vmul.f32 %v61, %v126
  %v139 = vmul.f32 %v66, %v122
  %v140 = vmul.f32 %v66, %v126
  %v141 = vmul.f32 %v71, %v122
  %v142 = vmul.f32 %v71, %v126
  %v143 = vmul.f32 %v76, %v122
  %v144 = vmul.f32 %v76, %v126
  %v145 = vmul.f32 %v81, %v122
  %v146 = vmul.f32 %v81, %v126
  %v147 = vmul.f32 %v86, %v122
  %v148 = vmul.f32 %v86, %v126
  %v149 = vmul.f32 %v91, %v122
  %v150 = vmul.f32 %v91, %v126
  %v151 = vmul.f32 %v96, %v122
  %v152 = vmul.f32 %v96, %v126
  %v153 = vmul.f32 %v101, %v122
  %v154 = vmul.f32 %v101, %v126
  %v155 = vmul.f32 %v106, %v122
  %v156 = vmul.f32 %v106, %v126
  %v157 = vmul.f32 %v111, %v122
  %v158 = vmul.f32 %v111, %v126
  %v159 = vmul.f32 %v116, %v122
  %v160 = vmul.f32 %v116, %v126
  %v162 = vlaneseq
  %v163 = vshrl.u32 %v162, 7
  %v164 = vsub.s32 0, %v163
  %v165 = vrot.slane %v36, %v164
  %v166 = vlaneseq
  %v167 = vshrl.u32 %v166, 7
  %v168 = vsub.s32 1, %v167
  %v169 = vrot.slane %v36, %v168
  %v172 = vadd.f32 %v165, %v129
  %v173 = vadd.f32 %v169, %v130
  %v174 = vadd.f32 %v165, %v131
  %v175 = vadd.f32 %v169, %v132
  %v176 = vadd.f32 %v165, %v133
  %v177 = vadd.f32 %v169, %v134
  %v178 = vadd.f32 %v165, %v135
  %v179 = vadd.f32 %v169, %v136
  %v180 = vadd.f32 %v165, %v137
  %v181 = vadd.f32 %v169, %v138
  %v182 = vadd.f32 %v165, %v139
  %v183 = vadd.f32 %v169, %v140
  %v184 = vadd.f32 %v165, %v141
  %v185 = vadd.f32 %v169, %v142
  %v186 = vadd.f32 %v165, %v143
  %v187 = vadd.f32 %v169, %v144
  %v188 = vadd.f32 %v165, %v145
  %v189 = vadd.f32 %v169, %v146
  %v190 = vadd.f32 %v165, %v147
  %v191 = vadd.f32 %v169, %v148
  %v192 = vadd.f32 %v165, %v149
  %v193 = vadd.f32 %v169, %v150
  %v194 = vadd.f32 %v165, %v151
  %v195 = vadd.f32 %v169, %v152
  %v196 = vadd.f32 %v165, %v153
  %v197 = vadd.f32 %v169, %v154
  %v198 = vadd.f32 %v165, %v155
  %v199 = vadd.f32 %v169, %v156
  %v200 = vadd.f32 %v165, %v157
  %v201 = vadd.f32 %v169, %v158
  %v202 = vadd.f32 %v165, %v159
  %v203 = vadd.f32 %v169, %v160
  %s204 = scalar_lea.vmem %s1, 1
  %v205 = vld [vmem:[%s204] ss:$4 sm:$0x3]
  %206 = vset.pattern.permute.xlu0 1
  %207 = vperm.xlu0 %206, %v20
  %v208 = vpop.permute.xlu0 %207
  %210 = vset.pattern.permute.xlu0 1
  %211 = vperm.xlu0 %210, %v21
  %v212 = vpop.permute.xlu0 %211
  %214 = vset.pattern.permute.xlu0 1
  %215 = vperm.xlu0 %214, %v22
  %v216 = vpop.permute.xlu0 %215
  %218 = vset.pattern.permute.xlu0 1
  %219 = vperm.xlu0 %218, %v23
  %v220 = vpop.permute.xlu0 %219
  %222 = vset.pattern.permute.xlu0 1
  %223 = vperm.xlu0 %222, %v24
  %v224 = vpop.permute.xlu0 %223
  %226 = vset.pattern.permute.xlu0 1
  %227 = vperm.xlu0 %226, %v25
  %v228 = vpop.permute.xlu0 %227
  %230 = vset.pattern.permute.xlu0 1
  %231 = vperm.xlu0 %230, %v26
  %v232 = vpop.permute.xlu0 %231
  %234 = vset.pattern.permute.xlu0 1
  %235 = vperm.xlu0 %234, %v27
  %v236 = vpop.permute.xlu0 %235
  %238 = vset.pattern.permute.xlu0 1
  %239 = vperm.xlu0 %238, %v28
  %v240 = vpop.permute.xlu0 %239
  %242 = vset.pattern.permute.xlu0 1
  %243 = vperm.xlu0 %242, %v29
  %v244 = vpop.permute.xlu0 %243
  %246 = vset.pattern.permute.xlu0 1
  %247 = vperm.xlu0 %246, %v30
  %v248 = vpop.permute.xlu0 %247
  %250 = vset.pattern.permute.xlu0 1
  %251 = vperm.xlu0 %250, %v31
  %v252 = vpop.permute.xlu0 %251
  %254 = vset.pattern.permute.xlu0 1
  %255 = vperm.xlu0 %254, %v32
  %v256 = vpop.permute.xlu0 %255
  %258 = vset.pattern.permute.xlu0 1
  %259 = vperm.xlu0 %258, %v33
  %v260 = vpop.permute.xlu0 %259
  %262 = vset.pattern.permute.xlu0 1
  %263 = vperm.xlu0 %262, %v34
  %v264 = vpop.permute.xlu0 %263
  %266 = vset.pattern.permute.xlu0 1
  %267 = vperm.xlu0 %266, %v35
  %v268 = vpop.permute.xlu0 %267
  %v271 = vlaneseq
  %v272 = vshrl.u32 %v271, 7
  %v273 = vsub.s32 0, %v272
  %v274 = vrot.slane %v205, %v273
  %v275 = vlaneseq
  %v276 = vshrl.u32 %v275, 7
  %v277 = vsub.s32 1, %v276
  %v278 = vrot.slane %v205, %v277
  %v281 = vmul.f32 %v208, %v274
  %v282 = vmul.f32 %v208, %v278
  %v283 = vmul.f32 %v212, %v274
  %v284 = vmul.f32 %v212, %v278
  %v285 = vmul.f32 %v216, %v274
  %v286 = vmul.f32 %v216, %v278
  %v287 = vmul.f32 %v220, %v274
  %v288 = vmul.f32 %v220, %v278
  %v289 = vmul.f32 %v224, %v274
  %v290 = vmul.f32 %v224, %v278
  %v291 = vmul.f32 %v228, %v274
  %v292 = vmul.f32 %v228, %v278
  %v293 = vmul.f32 %v232, %v274
  %v294 = vmul.f32 %v232, %v278
  %v295 = vmul.f32 %v236, %v274
  %v296 = vmul.f32 %v236, %v278
  %v297 = vmul.f32 %v240, %v274
  %v298 = vmul.f32 %v240, %v278
  %v299 = vmul.f32 %v244, %v274
  %v300 = vmul.f32 %v244, %v278
  %v301 = vmul.f32 %v248, %v274
  %v302 = vmul.f32 %v248, %v278
  %v303 = vmul.f32 %v252, %v274
  %v304 = vmul.f32 %v252, %v278
  %v305 = vmul.f32 %v256, %v274
  %v306 = vmul.f32 %v256, %v278
  %v307 = vmul.f32 %v260, %v274
  %v308 = vmul.f32 %v260, %v278
  %v309 = vmul.f32 %v264, %v274
  %v310 = vmul.f32 %v264, %v278
  %v311 = vmul.f32 %v268, %v274
  %v312 = vmul.f32 %v268, %v278
  %v313 = vadd.f32 %v172, %v281
  %v314 = vadd.f32 %v173, %v282
  %v315 = vadd.f32 %v174, %v283
  %v316 = vadd.f32 %v175, %v284
  %v317 = vadd.f32 %v176, %v285
  %v318 = vadd.f32 %v177, %v286
  %v319 = vadd.f32 %v178, %v287
  %v320 = vadd.f32 %v179, %v288
  %v321 = vadd.f32 %v180, %v289
  %v322 = vadd.f32 %v181, %v290
  %v323 = vadd.f32 %v182, %v291
  %v324 = vadd.f32 %v183, %v292
  %v325 = vadd.f32 %v184, %v293
  %v326 = vadd.f32 %v185, %v294
  %v327 = vadd.f32 %v186, %v295
  %v328 = vadd.f32 %v187, %v296
  %v329 = vadd.f32 %v188, %v297
  %v330 = vadd.f32 %v189, %v298
  %v331 = vadd.f32 %v190, %v299
  %v332 = vadd.f32 %v191, %v300
  %v333 = vadd.f32 %v192, %v301
  %v334 = vadd.f32 %v193, %v302
  %v335 = vadd.f32 %v194, %v303
  %v336 = vadd.f32 %v195, %v304
  %v337 = vadd.f32 %v196, %v305
  %v338 = vadd.f32 %v197, %v306
  %v339 = vadd.f32 %v198, %v307
  %v340 = vadd.f32 %v199, %v308
  %v341 = vadd.f32 %v200, %v309
  %v342 = vadd.f32 %v201, %v310
  %v343 = vadd.f32 %v202, %v311
  %v344 = vadd.f32 %v203, %v312
  %s345 = scalar_lea.vmem %s1, 2
  %v346 = vld [vmem:[%s345] ss:$4 sm:$0x3]
  %347 = vset.pattern.permute.xlu0 2
  %348 = vperm.xlu0 %347, %v20
  %v349 = vpop.permute.xlu0 %348
  %351 = vset.pattern.permute.xlu0 2
  %352 = vperm.xlu0 %351, %v21
  %v353 = vpop.permute.xlu0 %352
  %355 = vset.pattern.permute.xlu0 2
  %356 = vperm.xlu0 %355, %v22
  %v357 = vpop.permute.xlu0 %356
  %359 = vset.pattern.permute.xlu0 2
  %360 = vperm.xlu0 %359, %v23
  %v361 = vpop.permute.xlu0 %360
  %363 = vset.pattern.permute.xlu0 2
  %364 = vperm.xlu0 %363, %v24
  %v365 = vpop.permute.xlu0 %364
  %367 = vset.pattern.permute.xlu0 2
  %368 = vperm.xlu0 %367, %v25
  %v369 = vpop.permute.xlu0 %368
  %371 = vset.pattern.permute.xlu0 2
  %372 = vperm.xlu0 %371, %v26
  %v373 = vpop.permute.xlu0 %372
  %375 = vset.pattern.permute.xlu0 2
  %376 = vperm.xlu0 %375, %v27
  %v377 = vpop.permute.xlu0 %376
  %379 = vset.pattern.permute.xlu0 2
  %380 = vperm.xlu0 %379, %v28
  %v381 = vpop.permute.xlu0 %380
  %383 = vset.pattern.permute.xlu0 2
  %384 = vperm.xlu0 %383, %v29
  %v385 = vpop.permute.xlu0 %384
  %387 = vset.pattern.permute.xlu0 2
  %388 = vperm.xlu0 %387, %v30
  %v389 = vpop.permute.xlu0 %388
  %391 = vset.pattern.permute.xlu0 2
  %392 = vperm.xlu0 %391, %v31
  %v393 = vpop.permute.xlu0 %392
  %395 = vset.pattern.permute.xlu0 2
  %396 = vperm.xlu0 %395, %v32
  %v397 = vpop.permute.xlu0 %396
  %399 = vset.pattern.permute.xlu0 2
  %400 = vperm.xlu0 %399, %v33
  %v401 = vpop.permute.xlu0 %400
  %403 = vset.pattern.permute.xlu0 2
  %404 = vperm.xlu0 %403, %v34
  %v405 = vpop.permute.xlu0 %404
  %407 = vset.pattern.permute.xlu0 2
  %408 = vperm.xlu0 %407, %v35
  %v409 = vpop.permute.xlu0 %408
  %v412 = vlaneseq
  %v413 = vshrl.u32 %v412, 7
  %v414 = vsub.s32 0, %v413
  %v415 = vrot.slane %v346, %v414
  %v416 = vlaneseq
  %v417 = vshrl.u32 %v416, 7
  %v418 = vsub.s32 1, %v417
  %v419 = vrot.slane %v346, %v418
  %v422 = vmul.f32 %v349, %v415
  %v423 = vmul.f32 %v349, %v419
  %v424 = vmul.f32 %v353, %v415
  %v425 = vmul.f32 %v353, %v419
  %v426 = vmul.f32 %v357, %v415
  %v427 = vmul.f32 %v357, %v419
  %v428 = vmul.f32 %v361, %v415
  %v429 = vmul.f32 %v361, %v419
  %v430 = vmul.f32 %v365, %v415
  %v431 = vmul.f32 %v365, %v419
  %v432 = vmul.f32 %v369, %v415
  %v433 = vmul.f32 %v369, %v419
  %v434 = vmul.f32 %v373, %v415
  %v435 = vmul.f32 %v373, %v419
  %v436 = vmul.f32 %v377, %v415
  %v437 = vmul.f32 %v377, %v419
  %v438 = vmul.f32 %v381, %v415
  %v439 = vmul.f32 %v381, %v419
  %v440 = vmul.f32 %v385, %v415
  %v441 = vmul.f32 %v385, %v419
  %v442 = vmul.f32 %v389, %v415
  %v443 = vmul.f32 %v389, %v419
  %v444 = vmul.f32 %v393, %v415
  %v445 = vmul.f32 %v393, %v419
  %v446 = vmul.f32 %v397, %v415
  %v447 = vmul.f32 %v397, %v419
  %v448 = vmul.f32 %v401, %v415
  %v449 = vmul.f32 %v401, %v419
  %v450 = vmul.f32 %v405, %v415
  %v451 = vmul.f32 %v405, %v419
  %v452 = vmul.f32 %v409, %v415
  %v453 = vmul.f32 %v409, %v419
  %v454 = vadd.f32 %v313, %v422
  %v455 = vadd.f32 %v314, %v423
  %v456 = vadd.f32 %v315, %v424
  %v457 = vadd.f32 %v316, %v425
  %v458 = vadd.f32 %v317, %v426
  %v459 = vadd.f32 %v318, %v427
  %v460 = vadd.f32 %v319, %v428
  %v461 = vadd.f32 %v320, %v429
  %v462 = vadd.f32 %v321, %v430
  %v463 = vadd.f32 %v322, %v431
  %v464 = vadd.f32 %v323, %v432
  %v465 = vadd.f32 %v324, %v433
  %v466 = vadd.f32 %v325, %v434
  %v467 = vadd.f32 %v326, %v435
  %v468 = vadd.f32 %v327, %v436
  %v469 = vadd.f32 %v328, %v437
  %v470 = vadd.f32 %v329, %v438
  %v471 = vadd.f32 %v330, %v439
  %v472 = vadd.f32 %v331, %v440
  %v473 = vadd.f32 %v332, %v441
  %v474 = vadd.f32 %v333, %v442
  %v475 = vadd.f32 %v334, %v443
  %v476 = vadd.f32 %v335, %v444
  %v477 = vadd.f32 %v336, %v445
  %v478 = vadd.f32 %v337, %v446
  %v479 = vadd.f32 %v338, %v447
  %v480 = vadd.f32 %v339, %v448
  %v481 = vadd.f32 %v340, %v449
  %v482 = vadd.f32 %v341, %v450
  %v483 = vadd.f32 %v342, %v451
  %v484 = vadd.f32 %v343, %v452
  %v485 = vadd.f32 %v344, %v453
  %s486 = scalar_lea.vmem %s1, 3
  %v487 = vld [vmem:[%s486] ss:$4 sm:$0x3]
  %488 = vset.pattern.permute.xlu0 3
  %489 = vperm.xlu0 %488, %v20
  %v490 = vpop.permute.xlu0 %489
  %492 = vset.pattern.permute.xlu0 3
  %493 = vperm.xlu0 %492, %v21
  %v494 = vpop.permute.xlu0 %493
  %496 = vset.pattern.permute.xlu0 3
  %497 = vperm.xlu0 %496, %v22
  %v498 = vpop.permute.xlu0 %497
  %500 = vset.pattern.permute.xlu0 3
  %501 = vperm.xlu0 %500, %v23
  %v502 = vpop.permute.xlu0 %501
  %504 = vset.pattern.permute.xlu0 3
  %505 = vperm.xlu0 %504, %v24
  %v506 = vpop.permute.xlu0 %505
  %508 = vset.pattern.permute.xlu0 3
  %509 = vperm.xlu0 %508, %v25
  %v510 = vpop.permute.xlu0 %509
  %512 = vset.pattern.permute.xlu0 3
  %513 = vperm.xlu0 %512, %v26
  %v514 = vpop.permute.xlu0 %513
  %516 = vset.pattern.permute.xlu0 3
  %517 = vperm.xlu0 %516, %v27
  %v518 = vpop.permute.xlu0 %517
  %520 = vset.pattern.permute.xlu0 3
  %521 = vperm.xlu0 %520, %v28
  %v522 = vpop.permute.xlu0 %521
  %524 = vset.pattern.permute.xlu0 3
  %525 = vperm.xlu0 %524, %v29
  %v526 = vpop.permute.xlu0 %525
  %528 = vset.pattern.permute.xlu0 3
  %529 = vperm.xlu0 %528, %v30
  %v530 = vpop.permute.xlu0 %529
  %532 = vset.pattern.permute.xlu0 3
  %533 = vperm.xlu0 %532, %v31
  %v534 = vpop.permute.xlu0 %533
  %536 = vset.pattern.permute.xlu0 3
  %537 = vperm.xlu0 %536, %v32
  %v538 = vpop.permute.xlu0 %537
  %540 = vset.pattern.permute.xlu0 3
  %541 = vperm.xlu0 %540, %v33
  %v542 = vpop.permute.xlu0 %541
  %544 = vset.pattern.permute.xlu0 3
  %545 = vperm.xlu0 %544, %v34
  %v546 = vpop.permute.xlu0 %545
  %548 = vset.pattern.permute.xlu0 3
  %549 = vperm.xlu0 %548, %v35
  %v550 = vpop.permute.xlu0 %549
  %v553 = vlaneseq
  %v554 = vshrl.u32 %v553, 7
  %v555 = vsub.s32 0, %v554
  %v556 = vrot.slane %v487, %v555
  %v557 = vlaneseq
  %v558 = vshrl.u32 %v557, 7
  %v559 = vsub.s32 1, %v558
  %v560 = vrot.slane %v487, %v559
  %v563 = vmul.f32 %v490, %v556
  %v564 = vmul.f32 %v490, %v560
  %v565 = vmul.f32 %v494, %v556
  %v566 = vmul.f32 %v494, %v560
  %v567 = vmul.f32 %v498, %v556
  %v568 = vmul.f32 %v498, %v560
  %v569 = vmul.f32 %v502, %v556
  %v570 = vmul.f32 %v502, %v560
  %v571 = vmul.f32 %v506, %v556
  %v572 = vmul.f32 %v506, %v560
  %v573 = vmul.f32 %v510, %v556
  %v574 = vmul.f32 %v510, %v560
  %v575 = vmul.f32 %v514, %v556
  %v576 = vmul.f32 %v514, %v560
  %v577 = vmul.f32 %v518, %v556
  %v578 = vmul.f32 %v518, %v560
  %v579 = vmul.f32 %v522, %v556
  %v580 = vmul.f32 %v522, %v560
  %v581 = vmul.f32 %v526, %v556
  %v582 = vmul.f32 %v526, %v560
  %v583 = vmul.f32 %v530, %v556
  %v584 = vmul.f32 %v530, %v560
  %v585 = vmul.f32 %v534, %v556
  %v586 = vmul.f32 %v534, %v560
  %v587 = vmul.f32 %v538, %v556
  %v588 = vmul.f32 %v538, %v560
  %v589 = vmul.f32 %v542, %v556
  %v590 = vmul.f32 %v542, %v560
  %v591 = vmul.f32 %v546, %v556
  %v592 = vmul.f32 %v546, %v560
  %v593 = vmul.f32 %v550, %v556
  %v594 = vmul.f32 %v550, %v560
  %v595 = vadd.f32 %v454, %v563
  %v596 = vadd.f32 %v455, %v564
  %v597 = vadd.f32 %v456, %v565
  %v598 = vadd.f32 %v457, %v566
  %v599 = vadd.f32 %v458, %v567
  %v600 = vadd.f32 %v459, %v568
  %v601 = vadd.f32 %v460, %v569
  %v602 = vadd.f32 %v461, %v570
  %v603 = vadd.f32 %v462, %v571
  %v604 = vadd.f32 %v463, %v572
  %v605 = vadd.f32 %v464, %v573
  %v606 = vadd.f32 %v465, %v574
  %v607 = vadd.f32 %v466, %v575
  %v608 = vadd.f32 %v467, %v576
  %v609 = vadd.f32 %v468, %v577
  %v610 = vadd.f32 %v469, %v578
  %v611 = vadd.f32 %v470, %v579
  %v612 = vadd.f32 %v471, %v580
  %v613 = vadd.f32 %v472, %v581
  %v614 = vadd.f32 %v473, %v582
  %v615 = vadd.f32 %v474, %v583
  %v616 = vadd.f32 %v475, %v584
  %v617 = vadd.f32 %v476, %v585
  %v618 = vadd.f32 %v477, %v586
  %v619 = vadd.f32 %v478, %v587
  %v620 = vadd.f32 %v479, %v588
  %v621 = vadd.f32 %v480, %v589
  %v622 = vadd.f32 %v481, %v590
  %v623 = vadd.f32 %v482, %v591
  %v624 = vadd.f32 %v483, %v592
  %v625 = vadd.f32 %v484, %v593
  %v626 = vadd.f32 %v485, %v594
  %vm627 = vcmp.gt.f32.partialorder %v595, 0.0
  %vm628 = vcmp.gt.f32.partialorder %v596, 0.0
  %vm629 = vcmp.gt.f32.partialorder %v597, 0.0
  %vm630 = vcmp.gt.f32.partialorder %v598, 0.0
  %vm631 = vcmp.gt.f32.partialorder %v599, 0.0
  %vm632 = vcmp.gt.f32.partialorder %v600, 0.0
  %vm633 = vcmp.gt.f32.partialorder %v601, 0.0
  %vm634 = vcmp.gt.f32.partialorder %v602, 0.0
  %vm635 = vcmp.gt.f32.partialorder %v603, 0.0
  %vm636 = vcmp.gt.f32.partialorder %v604, 0.0
  %vm637 = vcmp.gt.f32.partialorder %v605, 0.0
  %vm638 = vcmp.gt.f32.partialorder %v606, 0.0
  %vm639 = vcmp.gt.f32.partialorder %v607, 0.0
  %vm640 = vcmp.gt.f32.partialorder %v608, 0.0
  %vm641 = vcmp.gt.f32.partialorder %v609, 0.0
  %vm642 = vcmp.gt.f32.partialorder %v610, 0.0
  %vm643 = vcmp.gt.f32.partialorder %v611, 0.0
  %vm644 = vcmp.gt.f32.partialorder %v612, 0.0
  %vm645 = vcmp.gt.f32.partialorder %v613, 0.0
  %vm646 = vcmp.gt.f32.partialorder %v614, 0.0
  %vm647 = vcmp.gt.f32.partialorder %v615, 0.0
  %vm648 = vcmp.gt.f32.partialorder %v616, 0.0
  %vm649 = vcmp.gt.f32.partialorder %v617, 0.0
  %vm650 = vcmp.gt.f32.partialorder %v618, 0.0
  %vm651 = vcmp.gt.f32.partialorder %v619, 0.0
  %vm652 = vcmp.gt.f32.partialorder %v620, 0.0
  %vm653 = vcmp.gt.f32.partialorder %v621, 0.0
  %vm654 = vcmp.gt.f32.partialorder %v622, 0.0
  %vm655 = vcmp.gt.f32.partialorder %v623, 0.0
  %vm656 = vcmp.gt.f32.partialorder %v624, 0.0
  %vm657 = vcmp.gt.f32.partialorder %v625, 0.0
  %vm658 = vcmp.gt.f32.partialorder %v626, 0.0
  %v659 = vmul.f32 %v595, 0.01
  %v660 = vmul.f32 %v596, 0.01
  %v661 = vmul.f32 %v597, 0.01
  %v662 = vmul.f32 %v598, 0.01
  %v663 = vmul.f32 %v599, 0.01
  %v664 = vmul.f32 %v600, 0.01
  %v665 = vmul.f32 %v601, 0.01
  %v666 = vmul.f32 %v602, 0.01
  %v667 = vmul.f32 %v603, 0.01
  %v668 = vmul.f32 %v604, 0.01
  %v669 = vmul.f32 %v605, 0.01
  %v670 = vmul.f32 %v606, 0.01
  %v671 = vmul.f32 %v607, 0.01
  %v672 = vmul.f32 %v608, 0.01
  %v673 = vmul.f32 %v609, 0.01
  %v674 = vmul.f32 %v610, 0.01
  %v675 = vmul.f32 %v611, 0.01
  %v676 = vmul.f32 %v612, 0.01
  %v677 = vmul.f32 %v613, 0.01
  %v678 = vmul.f32 %v614, 0.01
  %v679 = vmul.f32 %v615, 0.01
  %v680 = vmul.f32 %v616, 0.01
  %v681 = vmul.f32 %v617, 0.01
  %v682 = vmul.f32 %v618, 0.01
  %v683 = vmul.f32 %v619, 0.01
  %v684 = vmul.f32 %v620, 0.01
  %v685 = vmul.f32 %v621, 0.01
  %v686 = vmul.f32 %v622, 0.01
  %v687 = vmul.f32 %v623, 0.01
  %v688 = vmul.f32 %v624, 0.01
  %v689 = vmul.f32 %v625, 0.01
  %v690 = vmul.f32 %v626, 0.01
  %v691 = vsel %vm627, %v595, %v659
  %v692 = vsel %vm628, %v596, %v660
  %v693 = vsel %vm629, %v597, %v661
  %v694 = vsel %vm630, %v598, %v662
  %v695 = vsel %vm631, %v599, %v663
  %v696 = vsel %vm632, %v600, %v664
  %v697 = vsel %vm633, %v601, %v665
  %v698 = vsel %vm634, %v602, %v666
  %v699 = vsel %vm635, %v603, %v667
  %v700 = vsel %vm636, %v604, %v668
  %v701 = vsel %vm637, %v605, %v669
  %v702 = vsel %vm638, %v606, %v670
  %v703 = vsel %vm639, %v607, %v671
  %v704 = vsel %vm640, %v608, %v672
  %v705 = vsel %vm641, %v609, %v673
  %v706 = vsel %vm642, %v610, %v674
  %v707 = vsel %vm643, %v611, %v675
  %v708 = vsel %vm644, %v612, %v676
  %v709 = vsel %vm645, %v613, %v677
  %v710 = vsel %vm646, %v614, %v678
  %v711 = vsel %vm647, %v615, %v679
  %v712 = vsel %vm648, %v616, %v680
  %v713 = vsel %vm649, %v617, %v681
  %v714 = vsel %vm650, %v618, %v682
  %v715 = vsel %vm651, %v619, %v683
  %v716 = vsel %vm652, %v620, %v684
  %v717 = vsel %vm653, %v621, %v685
  %v718 = vsel %vm654, %v622, %v686
  %v719 = vsel %vm655, %v623, %v687
  %v720 = vsel %vm656, %v624, %v688
  %v721 = vsel %vm657, %v625, %v689
  %v722 = vsel %vm658, %v626, %v690
  %v723 = vld [vmem:[%s3] sm:$0xf]
  %v725 = vlaneseq
  %v726 = vshrl.u32 %v725, 7
  %v727 = vsub.s32 0, %v726
  %v728 = vrot.slane %v723, %v727
  %v729 = vlaneseq
  %v730 = vshrl.u32 %v729, 7
  %v731 = vsub.s32 2, %v730
  %v732 = vrot.slane %v723, %v731
  %v735 = vlaneseq
  %v736 = vshrl.u32 %v735, 7
  %v737 = vsub.s32 0, %v736
  %v738 = vrot.slane %v728, %v737
  %v739 = vlaneseq
  %v740 = vshrl.u32 %v739, 7
  %v741 = vsub.s32 0, %v740
  %v742 = vrot.slane %v732, %v741
  %v743 = vmul.f32 %v691, %v738
  %v744 = vmul.f32 %v692, %v742
  %v745 = vmul.f32 %v693, %v738
  %v746 = vmul.f32 %v694, %v742
  %v747 = vmul.f32 %v695, %v738
  %v748 = vmul.f32 %v696, %v742
  %v749 = vmul.f32 %v697, %v738
  %v750 = vmul.f32 %v698, %v742
  %v751 = vmul.f32 %v699, %v738
  %v752 = vmul.f32 %v700, %v742
  %v753 = vmul.f32 %v701, %v738
  %v754 = vmul.f32 %v702, %v742
  %v755 = vmul.f32 %v703, %v738
  %v756 = vmul.f32 %v704, %v742
  %v757 = vmul.f32 %v705, %v738
  %v758 = vmul.f32 %v706, %v742
  %v759 = vmul.f32 %v707, %v738
  %v760 = vmul.f32 %v708, %v742
  %v761 = vmul.f32 %v709, %v738
  %v762 = vmul.f32 %v710, %v742
  %v763 = vmul.f32 %v711, %v738
  %v764 = vmul.f32 %v712, %v742
  %v765 = vmul.f32 %v713, %v738
  %v766 = vmul.f32 %v714, %v742
  %v767 = vmul.f32 %v715, %v738
  %v768 = vmul.f32 %v716, %v742
  %v769 = vmul.f32 %v717, %v738
  %v770 = vmul.f32 %v718, %v742
  %v771 = vmul.f32 %v719, %v738
  %v772 = vmul.f32 %v720, %v742
  %v773 = vmul.f32 %v721, %v738
  %v774 = vmul.f32 %v722, %v742
  %vm775 = vcmask 179200
  %v776 = vsel %vm775, %v744, 0.0
  %v777 = vadd.f32 %v743, %v776
  %778 = vadd.xlane.f32.xlu0 %v777
  %v779 = vpop.xlane.xlu0 %778
  %v780 = vsel %vm775, %v746, 0.0
  %v781 = vadd.f32 %v745, %v780
  %782 = vadd.xlane.f32.xlu0 %v781
  %v783 = vpop.xlane.xlu0 %782
  %v784 = vsel %vm775, %v748, 0.0
  %v785 = vadd.f32 %v747, %v784
  %786 = vadd.xlane.f32.xlu0 %v785
  %v787 = vpop.xlane.xlu0 %786
  %v788 = vsel %vm775, %v750, 0.0
  %v789 = vadd.f32 %v749, %v788
  %790 = vadd.xlane.f32.xlu0 %v789
  %v791 = vpop.xlane.xlu0 %790
  %v792 = vsel %vm775, %v752, 0.0
  %v793 = vadd.f32 %v751, %v792
  %794 = vadd.xlane.f32.xlu0 %v793
  %v795 = vpop.xlane.xlu0 %794
  %v796 = vsel %vm775, %v754, 0.0
  %v797 = vadd.f32 %v753, %v796
  %798 = vadd.xlane.f32.xlu0 %v797
  %v799 = vpop.xlane.xlu0 %798
  %v800 = vsel %vm775, %v756, 0.0
  %v801 = vadd.f32 %v755, %v800
  %802 = vadd.xlane.f32.xlu0 %v801
  %v803 = vpop.xlane.xlu0 %802
  %v804 = vsel %vm775, %v758, 0.0
  %v805 = vadd.f32 %v757, %v804
  %806 = vadd.xlane.f32.xlu0 %v805
  %v807 = vpop.xlane.xlu0 %806
  %v808 = vsel %vm775, %v760, 0.0
  %v809 = vadd.f32 %v759, %v808
  %810 = vadd.xlane.f32.xlu0 %v809
  %v811 = vpop.xlane.xlu0 %810
  %v812 = vsel %vm775, %v762, 0.0
  %v813 = vadd.f32 %v761, %v812
  %814 = vadd.xlane.f32.xlu0 %v813
  %v815 = vpop.xlane.xlu0 %814
  %v816 = vsel %vm775, %v764, 0.0
  %v817 = vadd.f32 %v763, %v816
  %818 = vadd.xlane.f32.xlu0 %v817
  %v819 = vpop.xlane.xlu0 %818
  %v820 = vsel %vm775, %v766, 0.0
  %v821 = vadd.f32 %v765, %v820
  %822 = vadd.xlane.f32.xlu0 %v821
  %v823 = vpop.xlane.xlu0 %822
  %v824 = vsel %vm775, %v768, 0.0
  %v825 = vadd.f32 %v767, %v824
  %826 = vadd.xlane.f32.xlu0 %v825
  %v827 = vpop.xlane.xlu0 %826
  %v828 = vsel %vm775, %v770, 0.0
  %v829 = vadd.f32 %v769, %v828
  %830 = vadd.xlane.f32.xlu0 %v829
  %v831 = vpop.xlane.xlu0 %830
  %v832 = vsel %vm775, %v772, 0.0
  %v833 = vadd.f32 %v771, %v832
  %834 = vadd.xlane.f32.xlu0 %v833
  %v835 = vpop.xlane.xlu0 %834
  %v836 = vsel %vm775, %v774, 0.0
  %v837 = vadd.f32 %v773, %v836
  %838 = vadd.xlane.f32.xlu0 %v837
  %v839 = vpop.xlane.xlu0 %838
  %v840 = vlaneseq
  %v841 = vshrl.u32 %v840, 7
  %v842 = vsub.s32 1, %v841
  %v843 = vrot.slane %v723, %v842
  %v844 = vlaneseq
  %v845 = vshrl.u32 %v844, 7
  %v846 = vsub.s32 3, %v845
  %v847 = vrot.slane %v723, %v846
  %v850 = vlaneseq
  %v851 = vshrl.u32 %v850, 7
  %v852 = vsub.s32 1, %v851
  %v853 = vrot.slane %v843, %v852
  %v854 = vlaneseq
  %v855 = vshrl.u32 %v854, 7
  %v856 = vsub.s32 1, %v855
  %v857 = vrot.slane %v847, %v856
  %v858 = vmul.f32 %v691, %v853
  %v859 = vmul.f32 %v692, %v857
  %v860 = vmul.f32 %v693, %v853
  %v861 = vmul.f32 %v694, %v857
  %v862 = vmul.f32 %v695, %v853
  %v863 = vmul.f32 %v696, %v857
  %v864 = vmul.f32 %v697, %v853
  %v865 = vmul.f32 %v698, %v857
  %v866 = vmul.f32 %v699, %v853
  %v867 = vmul.f32 %v700, %v857
  %v868 = vmul.f32 %v701, %v853
  %v869 = vmul.f32 %v702, %v857
  %v870 = vmul.f32 %v703, %v853
  %v871 = vmul.f32 %v704, %v857
  %v872 = vmul.f32 %v705, %v853
  %v873 = vmul.f32 %v706, %v857
  %v874 = vmul.f32 %v707, %v853
  %v875 = vmul.f32 %v708, %v857
  %v876 = vmul.f32 %v709, %v853
  %v877 = vmul.f32 %v710, %v857
  %v878 = vmul.f32 %v711, %v853
  %v879 = vmul.f32 %v712, %v857
  %v880 = vmul.f32 %v713, %v853
  %v881 = vmul.f32 %v714, %v857
  %v882 = vmul.f32 %v715, %v853
  %v883 = vmul.f32 %v716, %v857
  %v884 = vmul.f32 %v717, %v853
  %v885 = vmul.f32 %v718, %v857
  %v886 = vmul.f32 %v719, %v853
  %v887 = vmul.f32 %v720, %v857
  %v888 = vmul.f32 %v721, %v853
  %v889 = vmul.f32 %v722, %v857
  %v890 = vsel %vm775, %v859, 0.0
  %v891 = vadd.f32 %v858, %v890
  %892 = vadd.xlane.f32.xlu0 %v891
  %v893 = vpop.xlane.xlu0 %892
  %v894 = vsel %vm775, %v861, 0.0
  %v895 = vadd.f32 %v860, %v894
  %896 = vadd.xlane.f32.xlu0 %v895
  %v897 = vpop.xlane.xlu0 %896
  %v898 = vsel %vm775, %v863, 0.0
  %v899 = vadd.f32 %v862, %v898
  %900 = vadd.xlane.f32.xlu0 %v899
  %v901 = vpop.xlane.xlu0 %900
  %v902 = vsel %vm775, %v865, 0.0
  %v903 = vadd.f32 %v864, %v902
  %904 = vadd.xlane.f32.xlu0 %v903
  %v905 = vpop.xlane.xlu0 %904
  %v906 = vsel %vm775, %v867, 0.0
  %v907 = vadd.f32 %v866, %v906
  %908 = vadd.xlane.f32.xlu0 %v907
  %v909 = vpop.xlane.xlu0 %908
  %v910 = vsel %vm775, %v869, 0.0
  %v911 = vadd.f32 %v868, %v910
  %912 = vadd.xlane.f32.xlu0 %v911
  %v913 = vpop.xlane.xlu0 %912
  %v914 = vsel %vm775, %v871, 0.0
  %v915 = vadd.f32 %v870, %v914
  %916 = vadd.xlane.f32.xlu0 %v915
  %v917 = vpop.xlane.xlu0 %916
  %v918 = vsel %vm775, %v873, 0.0
  %v919 = vadd.f32 %v872, %v918
  %920 = vadd.xlane.f32.xlu0 %v919
  %v921 = vpop.xlane.xlu0 %920
  %v922 = vsel %vm775, %v875, 0.0
  %v923 = vadd.f32 %v874, %v922
  %924 = vadd.xlane.f32.xlu0 %v923
  %v925 = vpop.xlane.xlu0 %924
  %v926 = vsel %vm775, %v877, 0.0
  %v927 = vadd.f32 %v876, %v926
  %928 = vadd.xlane.f32.xlu0 %v927
  %v929 = vpop.xlane.xlu0 %928
  %v930 = vsel %vm775, %v879, 0.0
  %v931 = vadd.f32 %v878, %v930
  %932 = vadd.xlane.f32.xlu0 %v931
  %v933 = vpop.xlane.xlu0 %932
  %v934 = vsel %vm775, %v881, 0.0
  %v935 = vadd.f32 %v880, %v934
  %936 = vadd.xlane.f32.xlu0 %v935
  %v937 = vpop.xlane.xlu0 %936
  %v938 = vsel %vm775, %v883, 0.0
  %v939 = vadd.f32 %v882, %v938
  %940 = vadd.xlane.f32.xlu0 %v939
  %v941 = vpop.xlane.xlu0 %940
  %v942 = vsel %vm775, %v885, 0.0
  %v943 = vadd.f32 %v884, %v942
  %944 = vadd.xlane.f32.xlu0 %v943
  %v945 = vpop.xlane.xlu0 %944
  %v946 = vsel %vm775, %v887, 0.0
  %v947 = vadd.f32 %v886, %v946
  %948 = vadd.xlane.f32.xlu0 %v947
  %v949 = vpop.xlane.xlu0 %948
  %v950 = vsel %vm775, %v889, 0.0
  %v951 = vadd.f32 %v888, %v950
  %952 = vadd.xlane.f32.xlu0 %v951
  %v953 = vpop.xlane.xlu0 %952
  %vm954 = vcmask 7168
  %v955 = vsel %vm954, %v779, %v893
  %v956 = vsel %vm954, %v783, %v897
  %v957 = vsel %vm954, %v787, %v901
  %v958 = vsel %vm954, %v791, %v905
  %v959 = vsel %vm954, %v795, %v909
  %v960 = vsel %vm954, %v799, %v913
  %v961 = vsel %vm954, %v803, %v917
  %v962 = vsel %vm954, %v807, %v921
  %v963 = vsel %vm954, %v811, %v925
  %v964 = vsel %vm954, %v815, %v929
  %v965 = vsel %vm954, %v819, %v933
  %v966 = vsel %vm954, %v823, %v937
  %v967 = vsel %vm954, %v827, %v941
  %v968 = vsel %vm954, %v831, %v945
  %v969 = vsel %vm954, %v835, %v949
  %v970 = vsel %vm954, %v839, %v953
  %v971 = vld [vmem:[%s4] sm:$0x1]
  %v973 = vlaneseq
  %v974 = vshrl.u32 %v973, 7
  %v975 = vsub.s32 0, %v974
  %v976 = vrot.slane %v971, %v975
  %v978 = vadd.f32 %v955, %v976
  %v979 = vadd.f32 %v956, %v976
  %v980 = vadd.f32 %v957, %v976
  %v981 = vadd.f32 %v958, %v976
  %v982 = vadd.f32 %v959, %v976
  %v983 = vadd.f32 %v960, %v976
  %v984 = vadd.f32 %v961, %v976
  %v985 = vadd.f32 %v962, %v976
  %v986 = vadd.f32 %v963, %v976
  %v987 = vadd.f32 %v964, %v976
  %v988 = vadd.f32 %v965, %v976
  %v989 = vadd.f32 %v966, %v976
  %v990 = vadd.f32 %v967, %v976
  %v991 = vadd.f32 %v968, %v976
  %v992 = vadd.f32 %v969, %v976
  %v993 = vadd.f32 %v970, %v976
  %vm994 = vcmask 15360
  %v995 = vsel %vm994, %v978, -inf
  %v996 = vsel %vm994, %v979, -inf
  %v997 = vsel %vm994, %v980, -inf
  %v998 = vsel %vm994, %v981, -inf
  %v999 = vsel %vm994, %v982, -inf
  %v1000 = vmax.f32 %v995, %v999
  %v1001 = vsel %vm994, %v983, -inf
  %v1002 = vmax.f32 %v996, %v1001
  %v1003 = vsel %vm994, %v984, -inf
  %v1004 = vmax.f32 %v997, %v1003
  %v1005 = vsel %vm994, %v985, -inf
  %v1006 = vmax.f32 %v998, %v1005
  %v1007 = vsel %vm994, %v986, -inf
  %v1008 = vmax.f32 %v1000, %v1007
  %v1009 = vsel %vm994, %v987, -inf
  %v1010 = vmax.f32 %v1002, %v1009
  %v1011 = vsel %vm994, %v988, -inf
  %v1012 = vmax.f32 %v1004, %v1011
  %v1013 = vsel %vm994, %v989, -inf
  %v1014 = vmax.f32 %v1006, %v1013
  %v1015 = vsel %vm994, %v990, -inf
  %v1016 = vmax.f32 %v1008, %v1015
  %v1017 = vsel %vm994, %v991, -inf
  %v1018 = vmax.f32 %v1010, %v1017
  %v1019 = vsel %vm994, %v992, -inf
  %v1020 = vmax.f32 %v1012, %v1019
  %v1021 = vsel %vm994, %v993, -inf
  %v1022 = vmax.f32 %v1014, %v1021
  %v1023 = vmax.f32 %v1016, %v1018
  %v1024 = vmax.f32 %v1020, %v1022
  %v1025 = vmax.f32 %v1023, %v1024
  %v1026 = vrot.slane %v1025, 4
  %v1027 = vmax.f32 %v1025, %v1026
  %v1028 = vrot.slane %v1027, 2
  %v1029 = vmax.f32 %v1027, %v1028
  %v1030 = vrot.slane %v1029, 1
  %v1031 = vmax.f32 %v1029, %v1030
  %v1032 = vsub.f32 %v978, %v1031
  %v1033 = vsub.f32 %v979, %v1031
  %v1034 = vsub.f32 %v980, %v1031
  %v1035 = vsub.f32 %v981, %v1031
  %v1036 = vsub.f32 %v982, %v1031
  %v1037 = vsub.f32 %v983, %v1031
  %v1038 = vsub.f32 %v984, %v1031
  %v1039 = vsub.f32 %v985, %v1031
  %v1040 = vsub.f32 %v986, %v1031
  %v1041 = vsub.f32 %v987, %v1031
  %v1042 = vsub.f32 %v988, %v1031
  %v1043 = vsub.f32 %v989, %v1031
  %v1044 = vsub.f32 %v990, %v1031
  %v1045 = vsub.f32 %v991, %v1031
  %v1046 = vsub.f32 %v992, %v1031
  %v1047 = vsub.f32 %v993, %v1031
  %v1048 = vmul.f32 %v1032, 1.442695
  %v1049 = vpow.pop %v1048
  %v1050 = vmul.f32 %v1033, 1.442695
  %v1051 = vpow.pop %v1050
  %v1052 = vmul.f32 %v1034, 1.442695
  %v1053 = vpow.pop %v1052
  %v1054 = vmul.f32 %v1035, 1.442695
  %v1055 = vpow.pop %v1054
  %v1056 = vmul.f32 %v1036, 1.442695
  %v1057 = vpow.pop %v1056
  %v1058 = vmul.f32 %v1037, 1.442695
  %v1059 = vpow.pop %v1058
  %v1060 = vmul.f32 %v1038, 1.442695
  %v1061 = vpow.pop %v1060
  %v1062 = vmul.f32 %v1039, 1.442695
  %v1063 = vpow.pop %v1062
  %v1064 = vmul.f32 %v1040, 1.442695
  %v1065 = vpow.pop %v1064
  %v1066 = vmul.f32 %v1041, 1.442695
  %v1067 = vpow.pop %v1066
  %v1068 = vmul.f32 %v1042, 1.442695
  %v1069 = vpow.pop %v1068
  %v1070 = vmul.f32 %v1043, 1.442695
  %v1071 = vpow.pop %v1070
  %v1072 = vmul.f32 %v1044, 1.442695
  %v1073 = vpow.pop %v1072
  %v1074 = vmul.f32 %v1045, 1.442695
  %v1075 = vpow.pop %v1074
  %v1076 = vmul.f32 %v1046, 1.442695
  %v1077 = vpow.pop %v1076
  %v1078 = vmul.f32 %v1047, 1.442695
  %v1079 = vpow.pop %v1078
  %v1080 = vsel %vm994, %v1049, 0.0
  %v1081 = vsel %vm994, %v1051, 0.0
  %v1082 = vadd.f32 %v1080, %v1081
  %v1083 = vsel %vm994, %v1053, 0.0
  %v1084 = vadd.f32 %v1082, %v1083
  %v1085 = vsel %vm994, %v1055, 0.0
  %v1086 = vadd.f32 %v1084, %v1085
  %v1087 = vsel %vm994, %v1057, 0.0
  %v1088 = vadd.f32 %v1086, %v1087
  %v1089 = vsel %vm994, %v1059, 0.0
  %v1090 = vadd.f32 %v1088, %v1089
  %v1091 = vsel %vm994, %v1061, 0.0
  %v1092 = vadd.f32 %v1090, %v1091
  %v1093 = vsel %vm994, %v1063, 0.0
  %v1094 = vadd.f32 %v1092, %v1093
  %v1095 = vsel %vm994, %v1065, 0.0
  %v1096 = vadd.f32 %v1094, %v1095
  %v1097 = vsel %vm994, %v1067, 0.0
  %v1098 = vadd.f32 %v1096, %v1097
  %v1099 = vsel %vm994, %v1069, 0.0
  %v1100 = vadd.f32 %v1098, %v1099
  %v1101 = vsel %vm994, %v1071, 0.0
  %v1102 = vadd.f32 %v1100, %v1101
  %v1103 = vsel %vm994, %v1073, 0.0
  %v1104 = vadd.f32 %v1102, %v1103
  %v1105 = vsel %vm994, %v1075, 0.0
  %v1106 = vadd.f32 %v1104, %v1105
  %v1107 = vsel %vm994, %v1077, 0.0
  %v1108 = vadd.f32 %v1106, %v1107
  %v1109 = vsel %vm994, %v1079, 0.0
  %v1110 = vadd.f32 %v1108, %v1109
  %v1111 = vrot.slane %v1110, 4
  %v1112 = vadd.f32 %v1110, %v1111
  %v1113 = vrot.slane %v1112, 2
  %v1114 = vadd.f32 %v1112, %v1113
  %v1115 = vrot.slane %v1114, 1
  %v1116 = vadd.f32 %v1114, %v1115
  %v1117 = vrcp.pop %v1116
  %v1118 = vmul.f32 %v1049, %v1117
  %v1119 = vmul.f32 %v1051, %v1117
  %v1120 = vmul.f32 %v1053, %v1117
  %v1121 = vmul.f32 %v1055, %v1117
  %v1122 = vmul.f32 %v1057, %v1117
  %v1123 = vmul.f32 %v1059, %v1117
  %v1124 = vmul.f32 %v1061, %v1117
  %v1125 = vmul.f32 %v1063, %v1117
  %v1126 = vmul.f32 %v1065, %v1117
  %v1127 = vmul.f32 %v1067, %v1117
  %v1128 = vmul.f32 %v1069, %v1117
  %v1129 = vmul.f32 %v1071, %v1117
  %v1130 = vmul.f32 %v1073, %v1117
  %v1131 = vmul.f32 %v1075, %v1117
  %v1132 = vmul.f32 %v1077, %v1117
  %v1133 = vmul.f32 %v1079, %v1117
  %1134 = vst.msk [vmem:[%s5] sm:$0xff] %vm994, %v1118
  %1135 = vst.msk [vmem:[%s5 + $0x8] sm:$0xff] %vm994, %v1119
  %1136 = vst.msk [vmem:[%s5 + $0x10] sm:$0xff] %vm994, %v1120
  %1137 = vst.msk [vmem:[%s5 + $0x18] sm:$0xff] %vm994, %v1121
  %1138 = vst.msk [vmem:[%s5 + $0x20] sm:$0xff] %vm994, %v1122
  %1139 = vst.msk [vmem:[%s5 + $0x28] sm:$0xff] %vm994, %v1123
  %1140 = vst.msk [vmem:[%s5 + $0x30] sm:$0xff] %vm994, %v1124
  %1141 = vst.msk [vmem:[%s5 + $0x38] sm:$0xff] %vm994, %v1125
  %1142 = vst.msk [vmem:[%s5 + $0x40] sm:$0xff] %vm994, %v1126
  %1143 = vst.msk [vmem:[%s5 + $0x48] sm:$0xff] %vm994, %v1127
  %1144 = vst.msk [vmem:[%s5 + $0x50] sm:$0xff] %vm994, %v1128
  %1145 = vst.msk [vmem:[%s5 + $0x58] sm:$0xff] %vm994, %v1129
  %1146 = vst.msk [vmem:[%s5 + $0x60] sm:$0xff] %vm994, %v1130
  %1147 = vst.msk [vmem:[%s5 + $0x68] sm:$0xff] %vm994, %v1131
  %1148 = vst.msk [vmem:[%s5 + $0x70] sm:$0xff] %vm994, %v1132
  %1149 = vst.msk [vmem:[%s5 + $0x78] sm:$0xff] %vm994, %v1133
  // Predicated region
  $region22: #{tpu_custom_call.1} parent=0 // pred_check
    _
  $region23: #{tpu_custom_call.1} parent=0 // pred_check_branch
    %1151 = sbr.rel (0) target = $region25
  $region24: #{tpu_custom_call.1} parent=0 // pred_region
    _
  $region25: #{tpu_custom_call.1} parent=0 // pred_fallthru
    _
  // Predicated region
  $region26: #{tpu_custom_call.1} parent=0 // pred_check
    _
  $region27: #{tpu_custom_call.1} parent=0 // pred_check_branch
    %1153 = sbr.rel (0) target = $region29
  $region28: #{tpu_custom_call.1} parent=0 // pred_region
    _
  $region29: #{tpu_custom_call.1} parent=0 // pred_fallthru
    _

</llo_original>
